<compile_context>
chip_gen: v7x
topology: tpu7x:2x2x1
jax: 0.10.0
libtpu: 0.0.40
codegen_flags: <defaults>
</compile_context>

<pallas_src>
import functools
from typing import NamedTuple

import jax
import jax.numpy as jnp
import numpy as np
from jax import lax
from jax.experimental import pallas as pl
from jax.experimental.pallas import tpu as pltpu

_DEFAULT_BLOCK_ELEMS = 1 << 20        # ~4 MiB f32 per input per pipeline buffer
_DEFAULT_SINGLE_PASS_ELEMS = 1 << 20  # <= ~4 MiB f32 per input -> whole problem VMEM-resident
_VMEM_LIMIT = 48 * 1024 * 1024        # < 64 MiB physical VMEM on v7x, ample headroom elsewhere


def _round_up(x, m):
    return -(-x // m) * m


class _Layout(NamedTuple):
    lane: int        # lane width of the flattened view (multiple of 128)
    pad: int         # zero padding (rare fallback only)
    rows: int        # rows of the (rows, lane) view (incl. padded rows)
    block_rows: int  # rows per tile (multiple of 8)
    n_blocks: int    # number of row blocks
    parts: int       # megacore partitions (grid axis 0)
    tpp: int         # tiles per partition (grid axis 1)
    shift: int       # partition 1 starts at block index `shift`
    overlap: bool    # partitions overlap by one block (partition 1 skips tile 0)


def _layout(n_elems, max_block_elems):
    lane = next((l for l in (512, 256, 128) if n_elems % l == 0), None)
    pad = 0
    if lane is None:
        lane = 128
        padded = _round_up(n_elems, 8 * lane)
        pad = padded - n_elems
        n_elems = padded
    rows = n_elems // lane

    target_rows = max(8, (max_block_elems // lane) // 8 * 8)
    block_rows = min(target_rows, _round_up(rows, 8))
    n_blocks = -(-rows // block_rows)

    # Prefer an even block count (clean 2-way megacore split, no redundant tile).
    if n_blocks >= 2 and n_blocks % 2 != 0:
        alt = max(8, _round_up(-(-rows // (n_blocks + 1)), 8))
        if (-(-rows // alt)) % 2 == 0:
            block_rows = alt
            n_blocks = -(-rows // alt)

    parts = 2 if n_blocks >= 2 else 1
    tpp = -(-n_blocks // parts)
    shift = n_blocks - tpp
    overlap = parts * tpp > n_blocks
    return _Layout(lane, pad, rows, block_rows, n_blocks, parts, tpp, shift, overlap)


def _masked_dispatch(accumulate, *, block_rows, lane, rows, n_blocks, shift, overlap):
    """Run `accumulate(valid_mask_or_None)`, masking only the (rare) tiles that need it."""
    p = pl.program_id(0)
    i = pl.program_id(1)
    g = p * shift + i                       # global block index
    ragged_last = (rows % block_rows) != 0  # static

    if not (ragged_last or overlap):
        accumulate(None)
        return

    conds = []
    if ragged_last:
        conds.append(g == n_blocks - 1)
    if overlap:
        conds.append((p == 1) & (i == 0))   # duplicate block handled by partition 0
    needs_mask = conds[0]
    for extra in conds[1:]:
        needs_mask = needs_mask | extra

    @pl.when(needs_mask)
    def _masked():
        row_ids = g * block_rows + lax.broadcasted_iota(jnp.int32, (block_rows, lane), 0)
        valid = row_ids < rows
        if overlap:
            valid = valid & jnp.logical_not((p == 1) & (i == 0))
        accumulate(valid)

    @pl.when(jnp.logical_not(needs_mask))
    def _full():
        accumulate(None)


def _max_diff_kernel(x_ref, t_ref, mx_ref, *, block_rows, lane, rows, n_blocks, shift, overlap):
    """Pass 1: running (8, lane)-shaped max of |t - x| across the 'arbitrary' tile axis."""
    @pl.when(pl.program_id(1) == 0)
    def _init():
        mx_ref[...] = jnp.zeros_like(mx_ref)   # diff >= 0, so 0 is the max identity

    def accumulate(valid_rows):
        d = jnp.abs(t_ref[...] - x_ref[...]).astype(jnp.float32)
        if valid_rows is not None:
            d = jnp.where(valid_rows, d, 0.0)  # masked / padded elements contribute 0
        part = jnp.max(d.reshape(block_rows // 8, 8, lane), axis=0)   # cross-vreg VPU max
        mx_ref[...] = jnp.maximum(mx_ref[...], part)

    _masked_dispatch(accumulate, block_rows=block_rows, lane=lane, rows=rows,
                     n_blocks=n_blocks, shift=shift, overlap=overlap)


def _berhu_sum_kernel(c_ref, x_ref, t_ref, s_ref, *, block_rows, lane, rows, n_blocks,
                      shift, overlap):
    """Pass 2: running (8, lane)-shaped sum of the BerHu loss given scalar cutoff C."""
    @pl.when(pl.program_id(1) == 0)
    def _init():
        s_ref[...] = jnp.zeros_like(s_ref)

    c = c_ref[0]            # scalar C from SMEM
    c_sq = c * c            # hoisted scalar
    c_half = 0.5 * c        # hoisted scalar; mirrors torch's `... / 2 * C` precedence

    def accumulate(valid_rows):
        d = jnp.abs(t_ref[...] - x_ref[...]).astype(jnp.float32)
        if valid_rows is not None:
            # masked elems -> d == 0 -> 0 contribution (strict < / > and c >= 0)
            d = jnp.where(valid_rows, d, 0.0)
        quad = (d * d + c_sq) * c_half
        loss = jnp.where(d < c, d, jnp.where(d > c, quad, 0.0))
        s_ref[...] += jnp.sum(loss.reshape(block_rows // 8, 8, lane), axis=0)

    _masked_dispatch(accumulate, block_rows=block_rows, lane=lane, rows=rows,
                     n_blocks=n_blocks, shift=shift, overlap=overlap)


def _berhu_single_kernel(x_ref, t_ref, o_ref, *, threshold, n_true):
    """Single-pass fast path: the whole problem is VMEM-resident (x/t read from HBM once)."""
    d = jnp.abs(t_ref[...] - x_ref[...]).astype(jnp.float32)
    c = threshold * jnp.max(d)
    quad = (d * d + c * c) * (0.5 * c)
    loss = jnp.where(d < c, d, jnp.where(d > c, quad, 0.0))
    o_ref[...] = jnp.broadcast_to(jnp.sum(loss) / n_true, (8, 128))


@functools.partial(jax.jit,
                   static_argnames=("threshold", "max_block_elems", "single_pass_max_elems"))
def berhu_loss(inputs, targets, threshold=1.0 / 5, *,
               max_block_elems=_DEFAULT_BLOCK_ELEMS,
               single_pass_max_elems=_DEFAULT_SINGLE_PASS_ELEMS):
    """inputs, targets: same-shape arrays (e.g. (N, C, H, W)). Returns a scalar f32 loss."""
    assert inputs.shape == targets.shape
    n_true = int(np.prod(inputs.shape))

    # ---------- single-pass, VMEM-resident fast path ----------
    if n_true % 128 == 0 and n_true <= single_pass_max_elems:
        lane = next(l for l in (512, 256, 128) if n_true % l == 0)
        rows = n_true // lane
        x2 = inputs.reshape(rows, lane)    # contiguous reshape: no copy
        t2 = targets.reshape(rows, lane)
        out = pl.pallas_call(
            functools.partial(_berhu_single_kernel, threshold=threshold, n_true=n_true),
            out_shape=jax.ShapeDtypeStruct((8, 128), jnp.float32),
            compiler_params=pltpu.CompilerParams(vmem_limit_bytes=_VMEM_LIMIT),
        )(x2, t2)
        return out[0, 0]

    # ---------- general two-pass streaming path ----------
    lay = _layout(n_true, max_block_elems)
    if lay.pad:
        # TODO(synk): rare ragged case (N % 128 != 0): jnp.pad copies both tensors; a 1-D
        # manual-DMA path with lane masking would avoid it.  Zero padding is benign:
        # diff == 0 contributes 0 to max(diff) and (strict < / >) to the loss sum.
        x_flat = jnp.pad(inputs.reshape(-1), (0, lay.pad))
        t_flat = jnp.pad(targets.reshape(-1), (0, lay.pad))
    else:
        x_flat = inputs.reshape(-1)        # free contiguous reshapes, no extra HBM pass
        t_flat = targets.reshape(-1)
    x2 = x_flat.reshape(lay.rows, lay.lane)
    t2 = t_flat.reshape(lay.rows, lay.lane)

    grid = (lay.parts, lay.tpp)
    shift = lay.shift
    data_spec = pl.BlockSpec((lay.block_rows, lay.lane), lambda p, i: (p * shift + i, 0))
    acc_spec = pl.BlockSpec((8, lay.lane), lambda p, i: (p, 0))
    cparams = pltpu.CompilerParams(dimension_semantics=("parallel", "arbitrary"),
                                   vmem_limit_bytes=_VMEM_LIMIT)
    static = dict(block_rows=lay.block_rows, lane=lay.lane, rows=lay.rows,
                  n_blocks=lay.n_blocks, shift=lay.shift, overlap=lay.overlap)

    # Pass 1: per-partition running max of |target - input|.
    mx = pl.pallas_call(
        functools.partial(_max_diff_kernel, **static),
        out_shape=jax.ShapeDtypeStruct((lay.parts * 8, lay.lane), jnp.float32),
        grid=grid,
        in_specs=[data_spec, data_spec],
        out_specs=acc_spec,
        compiler_params=cparams,
    )(x2, t2)
    c = (threshold * jnp.max(mx)).astype(jnp.float32).reshape(1)

    # Pass 2: per-partition partial sums of the BerHu loss, given scalar C.
    s = pl.pallas_call(
        functools.partial(_berhu_sum_kernel, **static),
        out_shape=jax.ShapeDtypeStruct((lay.parts * 8, lay.lane), jnp.float32),
        grid=grid,
        in_specs=[
            pl.BlockSpec(memory_space=pltpu.MemorySpace.SMEM),   # scalar C
            data_spec,
            data_spec,
        ],
        out_specs=acc_spec,
        compiler_params=cparams,
    )(c, x2, t2)

    return jnp.sum(s) / n_true


def _reference(inputs, targets, threshold=1.0 / 5):
    """Pure-JAX reference mirroring the PyTorch forward exactly."""
    x = inputs.astype(jnp.float32)
    t = targets.astype(jnp.float32)
    diff = jnp.abs(t - x)
    c = threshold * jnp.max(diff)
    l_eq = jnp.where(diff < c, diff, 0.0)
    l_other = jnp.where(diff > c, (diff * diff + c * c) * (0.5 * c), 0.0)
    return jnp.mean(l_eq + l_other)


if __name__ == "__main__":
    key = jax.random.PRNGKey(0)
    checks = []

    def make(shape, key):
        k1, k2, key = jax.random.split(key, 3)
        pred = jax.random.normal(k1, shape, dtype=jnp.float32)
        targ = jax.random.uniform(k2, shape, dtype=jnp.float32)
        return pred, targ, key

    # 1) Small image batch -> single-pass VMEM-resident fast path.
    pred, targ, key = make((2, 4, 16, 16), key)
    checks.append((berhu_loss(pred, targ), _reference(pred, targ)))

    # 2) Two-pass streaming path: even block count, 2-way split, ragged last block.
    pred, targ, key = make((2, 4, 40, 36), key)
    checks.append((berhu_loss(pred, targ, max_block_elems=2048, single_pass_max_elems=0),
                   _reference(pred, targ)))

    # 3) Two-pass path with an odd block count -> overlapped split + skip mask.
    checks.append((berhu_loss(pred, targ, max_block_elems=4096, single_pass_max_elems=0),
                   _reference(pred, targ)))

    # 4) Element count not divisible by 128 -> padded fallback of the streaming path.
    pred, targ, key = make((2, 3, 17, 19), key)
    checks.append((berhu_loss(pred, targ, single_pass_max_elems=0), _reference(pred, targ)))

    for got, want in checks:
        jax.block_until_ready(got)
        assert jnp.allclose(got, want, rtol=1e-5, atol=1e-6), (got, want)
    print("KERNEL_OK")
</pallas_src>

<mosaic_0001>
module attributes {stable_mosaic.version = 11 : i64} {
  func.func @_berhu_single_kernel(%arg0: memref<4x512xf32, #tpu.memory_space<vmem>>, %arg1: memref<4x512xf32, #tpu.memory_space<vmem>>, %arg2: memref<8x128xf32, #tpu.memory_space<vmem>>) attributes {dimension_semantics = [], scalar_prefetch = 0 : i64, scratch_operands = 0 : i64, tpu.core_type = #tpu.core_type<tc>} {
    %c0 = arith.constant 0 : index
    %c0_0 = arith.constant 0 : index
    %0 = vector.load %arg1[%c0, %c0_0] : memref<4x512xf32, #tpu.memory_space<vmem>>, vector<4x512xf32>
    %c0_1 = arith.constant 0 : index
    %c0_2 = arith.constant 0 : index
    %1 = vector.load %arg0[%c0_1, %c0_2] : memref<4x512xf32, #tpu.memory_space<vmem>>, vector<4x512xf32>
    %2 = arith.subf %0, %1 : vector<4x512xf32>
    %3 = math.absf %2 : vector<4x512xf32>
    %4 = vector.shape_cast %3 : vector<4x512xf32> to vector<1x4x512xf32>
    %cst = arith.constant dense<0xFF800000> : vector<1xf32>
    %5 = vector.multi_reduction <maximumf>, %4, %cst [1, 2] : vector<1x4x512xf32> to vector<1xf32>
    %6 = vector.shape_cast %5 : vector<1xf32> to vector<1x1x1xf32>
    %7 = vector.extract %6[0, 0, 0] : f32 from vector<1x1x1xf32>
    %cst_3 = arith.constant 2.000000e-01 : f32
    %8 = arith.mulf %cst_3, %7 : f32
    %9 = arith.mulf %3, %3 : vector<4x512xf32>
    %10 = arith.mulf %8, %8 : f32
    %11 = vector.broadcast %10 : f32 to vector<4x512xf32>
    %12 = arith.addf %9, %11 : vector<4x512xf32>
    %cst_4 = arith.constant 5.000000e-01 : f32
    %13 = arith.mulf %cst_4, %8 : f32
    %14 = vector.broadcast %13 : f32 to vector<4x512xf32>
    %15 = arith.mulf %12, %14 : vector<4x512xf32>
    %16 = vector.broadcast %8 : f32 to vector<4x512xf32>
    %17 = arith.cmpf olt, %3, %16 : vector<4x512xf32>
    %18 = vector.broadcast %8 : f32 to vector<4x512xf32>
    %19 = arith.cmpf ogt, %3, %18 : vector<4x512xf32>
    %cst_5 = arith.constant 0.000000e+00 : f32
    %20 = vector.broadcast %cst_5 : f32 to vector<4x512xf32>
    %21 = arith.select %19, %15, %20 : vector<4x512xi1>, vector<4x512xf32>
    %22 = arith.select %17, %3, %21 : vector<4x512xi1>, vector<4x512xf32>
    %23 = vector.shape_cast %22 : vector<4x512xf32> to vector<1x4x512xf32>
    %cst_6 = arith.constant dense<0.000000e+00> : vector<1xf32>
    %24 = vector.multi_reduction <add>, %23, %cst_6 [1, 2] : vector<1x4x512xf32> to vector<1xf32>
    %25 = vector.shape_cast %24 : vector<1xf32> to vector<1x1x1xf32>
    %26 = vector.extract %25[0, 0, 0] : f32 from vector<1x1x1xf32>
    %cst_7 = arith.constant 2.048000e+03 : f32
    %27 = arith.divf %26, %cst_7 : f32
    %28 = vector.broadcast %27 : f32 to vector<8x128xf32>
    %c0_8 = arith.constant 0 : index
    %c0_9 = arith.constant 0 : index
    %29 = vector.load %arg2[%c0_8, %c0_9] : memref<8x128xf32, #tpu.memory_space<vmem>>, vector<8x128xf32>
    tpu.vector_store %arg2[%c0_8, %c0_9], %28 {strides = array<i32>} : memref<8x128xf32, #tpu.memory_space<vmem>>, vector<8x128xf32>,
    return
  }
}

</mosaic_0001>

<llo_original>
// kernel: berhu_loss.1
$region0: #{berhu_loss.1}
  #allocation0 [shape = 'u32[]', space=smem, size = 0x4, offset = 0x4, fixed_abs, tag = 'smem constant byte address 0x4 - core index']
  #allocation1 [shape = 'u32[144,128]{1,0:T(1,128)}', space=vmem, size = 0x12000, scoped, tag = 'internal scratch']
  %s0 = inlined_call_operand.vmem [shape: f32[4,512], index: 0, kind: input, shape index: {}]
  %s1 = inlined_call_operand.vmem [shape: f32[4,512], index: 1, kind: input, shape index: {}]
  %s2 = inlined_call_operand.vmem [shape: f32[8,128], index: 2, kind: output, shape index: {}]
  %s3 = sld [smem:[#allocation0]]
  $region18: #{berhu_loss.1} parent=0
    _
  %s5 = ssub.s32 1, %s3
  %s6 = scalar_select 0, %s5, %s3
  // Predicated region
  $region2: #{berhu_loss.1} parent=0 // pred_check
    _
  $region3: #{berhu_loss.1} parent=0 // pred_check_branch
    %8 = sbr.rel (0) target = $region5
  $region4: #{berhu_loss.1} parent=0 // pred_region
    _
  $region5: #{berhu_loss.1} parent=0 // pred_fallthru
    _
  // Predicated region
  $region6: #{berhu_loss.1} parent=0 // pred_check
    _
  $region7: #{berhu_loss.1} parent=0 // pred_check_branch
    %10 = sbr.rel (0) target = $region9
  $region8: #{berhu_loss.1} parent=0 // pred_region
    _
  $region9: #{berhu_loss.1} parent=0 // pred_fallthru
    _
  %v11 = vld [vmem:[%s1] sm:$0xff]
  %v12 = vld [vmem:[%s1 + $0x8] sm:$0xff]
  %v13 = vld [vmem:[%s0] sm:$0xff]
  %v14 = vld [vmem:[%s0 + $0x8] sm:$0xff]
  %v15 = vsub.f32 %v11, %v13
  %v16 = vsub.f32 %v12, %v14
  %v17 = vand.u32 2147483647, %v15
  %v18 = vand.u32 2147483647, %v16
  %v21 = vcombine.high %v17, %v17
  %v22 = vcombine.high %v18, %v18
  %vm25 = vcmask 1043456
  %v26 = vsel %vm25, %v17, -inf
  %v27 = vsel %vm25, %v21, -inf
  %v28 = vsel %vm25, %v18, -inf
  %v29 = vsel %vm25, %v22, -inf
  %v30 = vmax.f32 %v26, %v27
  %v31 = vmax.f32 %v28, %v29
  %v32 = vmax.f32 %v30, %v31
  %33 = vmax.xlane.f32.xlu0 %v32
  %v34 = vpop.xlane.xlu0 %33
  %v35 = vrot.slane %v34, 4
  %v36 = vmax.f32 %v34, %v35
  %v37 = vrot.slane %v36, 2
  %v38 = vmax.f32 %v36, %v37
  %v39 = vrot.slane %v38, 1
  %v40 = vmax.f32 %v38, %v39
  %s41 = vtos %v40
  %s42 = smul.f32 %s41, 0.2
  %v43 = vmul.f32 %v17, %v17
  %v44 = vmul.f32 %v18, %v18
  %s45 = smul.f32 %s42, %s42
  %v46 = vstv %s45
  %v47 = vadd.f32 %v43, %v46
  %v48 = vadd.f32 %v44, %v46
  %s49 = smul.f32 %s42, 0.5
  %v50 = vstv %s49
  %v51 = vmul.f32 %v47, %v50
  %v52 = vmul.f32 %v48, %v50
  %v53 = vstv %s42
  %vm54 = vcmp.lt.f32.partialorder %v17, %v53
  %vm55 = vcmp.lt.f32.partialorder %v18, %v53
  %vm56 = vcmp.gt.f32.partialorder %v17, %v53
  %vm57 = vcmp.gt.f32.partialorder %v18, %v53
  %v58 = vsel %vm56, %v51, 0.0
  %v59 = vsel %vm57, %v52, 0.0
  %v60 = vsel %vm54, %v17, %v58
  %v61 = vsel %vm55, %v18, %v59
  %v64 = vcombine.high %v60, %v60
  %v65 = vcombine.high %v61, %v61
  %v68 = vsel %vm25, %v60, 0.0
  %v69 = vsel %vm25, %v64, 0.0
  %v70 = vadd.f32 %v68, %v69
  %v71 = vsel %vm25, %v61, 0.0
  %v72 = vadd.f32 %v70, %v71
  %v73 = vsel %vm25, %v65, 0.0
  %v74 = vadd.f32 %v72, %v73
  %75 = vadd.xlane.f32.xlu0 %v74
  %v76 = vpop.xlane.xlu0 %75
  %v77 = vrot.slane %v76, 4
  %v78 = vadd.f32 %v76, %v77
  %v79 = vrot.slane %v78, 2
  %v80 = vadd.f32 %v78, %v79
  %v81 = vrot.slane %v80, 1
  %v82 = vadd.f32 %v80, %v81
  %s83 = vtos %v82
  %v84 = vrcp.pop 2048.0
  %s85 = vtos %v84
  %s86 = smul.f32 %s83, %s85
  %v87 = vstv %s86
  %88 = vst [vmem:[%s2] sm:$0xff] %v87
  // Predicated region
  $region10: #{berhu_loss.1} parent=0 // pred_check
    _
  $region11: #{berhu_loss.1} parent=0 // pred_check_branch
    %90 = sbr.rel (0) target = $region13
  $region12: #{berhu_loss.1} parent=0 // pred_region
    _
  $region13: #{berhu_loss.1} parent=0 // pred_fallthru
    _
  // Predicated region
  $region14: #{berhu_loss.1} parent=0 // pred_check
    _
  $region15: #{berhu_loss.1} parent=0 // pred_check_branch
    %92 = sbr.rel (0) target = $region17
  $region16: #{berhu_loss.1} parent=0 // pred_region
    _
  $region17: #{berhu_loss.1} parent=0 // pred_fallthru
    _

</llo_original>
